<compile_context>
chip_gen: v5e
topology: v5e:2x2
jax: 0.10.0
libtpu: 0.0.40
codegen_flags: <defaults>
</compile_context>

<pallas_src>
import jax
import jax.numpy as jnp
from jax import lax
from jax.experimental import pallas as pl
from jax.experimental.pallas import tpu as pltpu


# ------------------------------ Pallas kernel -------------------------------

def _simconv3x3_bias_relu_kernel(x_ref, band_ref, bias_ref, o_ref, xpad_ref):
    """Fused conv3x3(+bias)+ReLU for one full image (one batch element).

    x_ref    : (H, W*Cin)         bf16  -- unpadded image, W/Cin lane-flattened
    band_ref : (3, W*Cin, W*Cout) bf16  -- kx shift + W zero-pad folded in
    bias_ref : (1, W*Cout)        f32
    o_ref    : (H, W*Cout)        bf16
    xpad_ref : (H+2, W*Cin)       bf16 VMEM scratch -- in-kernel H zero-padding
    """
    h = o_ref.shape[0]

    # In-kernel H padding: zero halo rows, image into rows 1..H.  Tiny
    # ((H+2)*W*Cin bf16) and avoids writing a padded activation copy to HBM.
    xpad_ref[...] = jnp.zeros_like(xpad_ref)
    xpad_ref[1:h + 1, :] = x_ref[...]

    # Bias folded into the accumulator init (one hoisted broadcast), followed
    # by a bare MXU accumulation chain (no interleaved VPU work between dots,
    # so v7x can keep the partials in the MRB).
    acc = jnp.broadcast_to(bias_ref[...], o_ref.shape)
    # NOTE: the ky=1,2 row offsets are not sublane-aligned for bf16; at this
    # tile size any relayout is noise.  For very large H tiles consider
    # pltpu.roll or landing the window pre-shifted instead.
    acc = acc + jnp.dot(xpad_ref[0:h, :], band_ref[0],
                        preferred_element_type=jnp.float32)
    acc = acc + jnp.dot(xpad_ref[1:h + 1, :], band_ref[1],
                        preferred_element_type=jnp.float32)
    acc = acc + jnp.dot(xpad_ref[2:h + 2, :], band_ref[2],
                        preferred_element_type=jnp.float32)

    # Lean epilogue: single max + cast, lane-dense bf16 store.
    o_ref[...] = jnp.maximum(acc, 0.0).astype(o_ref.dtype)


# ------------------------------ host-side glue -------------------------------

def fuse_conv_bn(w_oihw, conv_bias, gamma, beta, mean, var, eps=1e-5):
    """Fold Conv2d(bias=True) + BatchNorm2d (running stats) into (HWIO W, bias)."""
    scale = gamma / jnp.sqrt(var + eps)
    w_hwio = jnp.transpose(w_oihw * scale.reshape(-1, 1, 1, 1), (2, 3, 1, 0))
    bias = beta + (conv_bias - mean) * scale
    return w_hwio, bias


def _build_banded_weight(w_hwio, width):
    """band[ky, wi*Cin+ci, wo*Cout+co] = K[ky, wi-wo+1, ci, co] if |wi-wo|<=1 else 0.

    Folding kx and the SAME W-padding into the weight turns the conv into
    3 matmuls (H, W*Cin) @ (W*Cin, W*Cout) with a lane-dense output and no
    activation padding/shifting."""
    _, _, cin, cout = w_hwio.shape
    j = jnp.arange(width * cin)
    m = jnp.arange(width * cout)
    wi, ci = j // cin, j % cin
    wo, co = m // cout, m % cout
    kx = wi[:, None] - wo[None, :] + 1                 # (W*cin, W*cout)
    valid = (kx >= 0) & (kx < 3)
    kxc = jnp.clip(kx, 0, 2)
    ci_b = jnp.broadcast_to(ci[:, None], kx.shape)
    co_b = jnp.broadcast_to(co[None, :], kx.shape)

    def per_ky(ky):
        vals = w_hwio[ky][kxc, ci_b, co_b]
        return jnp.where(valid, vals, 0.0)

    return jnp.stack([per_ky(k) for k in range(3)], axis=0)


def simconv_forward_nhwc(x_nhwc, w_hwio, bias):
    """ReLU(conv3x3(x) + bias) on NHWC activations (BN already fused).

    Hot path: no transposes, no padded activation copy in HBM."""
    n, hh, ww, cin = x_nhwc.shape
    cout = w_hwio.shape[-1]
    kdim = ww * cin
    ndim = ww * cout

    band = _build_banded_weight(w_hwio, ww).astype(jnp.bfloat16)
    bias_row = jnp.tile(bias, ww).reshape(1, ndim).astype(jnp.float32)
    x = x_nhwc.astype(jnp.bfloat16).reshape(n, hh, kdim)     # free reshape

    # Actual VMEM footprint (double-buffered blocks + resident band + pad
    # scratch) with headroom; stays far below v7x's 64 MiB per TensorCore.
    block_bytes = (hh * kdim + hh * ndim) * 2
    weight_bytes = band.size * 2 + 8 * 128 * 4
    vmem_need = 2 * (block_bytes + weight_bytes) + (hh + 2) * kdim * 2
    vmem_limit = int(min(max(4 * vmem_need, 8 << 20), 48 << 20))

    out = pl.pallas_call(
        _simconv3x3_bias_relu_kernel,
        out_shape=jax.ShapeDtypeStruct((n, hh, ndim), jnp.bfloat16),
        grid=(n,),
        in_specs=[
            pl.BlockSpec((None, hh, kdim), lambda i: (i, 0, 0)),   # image i
            pl.BlockSpec((3, kdim, ndim), lambda i: (0, 0, 0)),    # band (resident)
            pl.BlockSpec((1, ndim), lambda i: (0, 0)),             # bias row
        ],
        out_specs=pl.BlockSpec((None, hh, ndim), lambda i: (i, 0, 0)),
        scratch_shapes=[pltpu.VMEM((hh + 2, kdim), jnp.bfloat16)],  # H-pad buffer
        compiler_params=pltpu.CompilerParams(
            dimension_semantics=("parallel",),   # batch across v7x TensorCores
            vmem_limit_bytes=vmem_limit,
        ),
        cost_estimate=pl.CostEstimate(
            # What the band matmuls actually do (W/3 x the conv's MACs).
            flops=2 * n * hh * 3 * kdim * ndim,
            transcendentals=0,
            bytes_accessed=(n * hh * kdim * 2 + n * hh * ndim * 2
                            + band.size * 2 + bias_row.size * 4),
        ),
    )(x, band, bias_row)

    return out.reshape(n, hh, ww, cout)          # free un-fold of W*Cout lanes


def simconv_forward(x_nchw, w_hwio, bias):
    """PyTorch-parity entry: NCHW f32 in, NCHW f32 out.

    In a real pipeline keep activations NHWC/bf16 between layers and call
    simconv_forward_nhwc directly — the transposes/casts here dominate HBM
    traffic for a single small layer."""
    x_nhwc = jnp.transpose(x_nchw, (0, 2, 3, 1))
    y = simconv_forward_nhwc(x_nhwc, w_hwio, bias)
    return jnp.transpose(y.astype(jnp.float32), (0, 3, 1, 2))


# ---------------------------------- main -------------------------------------

if __name__ == "__main__":
    N, C_IN, C_OUT, H, W = 2, 4, 8, 16, 16

    key = jax.random.PRNGKey(0)
    ks = jax.random.split(key, 7)
    x_nchw = jax.random.normal(ks[0], (N, C_IN, H, W), jnp.float32)      # PyTorch NCHW
    w_oihw = jax.random.normal(ks[1], (C_OUT, C_IN, 3, 3), jnp.float32) * 0.1
    conv_b = jax.random.normal(ks[2], (C_OUT,), jnp.float32) * 0.1
    gamma = jax.random.uniform(ks[3], (C_OUT,), jnp.float32, 0.5, 1.5)
    beta = jax.random.normal(ks[4], (C_OUT,), jnp.float32) * 0.1
    mean = jax.random.normal(ks[5], (C_OUT,), jnp.float32) * 0.1
    var = jax.random.uniform(ks[6], (C_OUT,), jnp.float32, 0.5, 1.5)

    w_hwio, b_fused = fuse_conv_bn(w_oihw, conv_b, gamma, beta, mean, var)

    fwd = jax.jit(simconv_forward)
    y = jax.block_until_ready(fwd(x_nchw, w_hwio, b_fused))
    assert y.shape == (N, C_OUT, H, W)

    # Pure-JAX reference at matching (bf16-rounded) precision.
    x_nhwc = jnp.transpose(x_nchw, (0, 2, 3, 1))
    x_bf = x_nhwc.astype(jnp.bfloat16).astype(jnp.float32)
    w_bf = w_hwio.astype(jnp.bfloat16).astype(jnp.float32)
    ref = jax.nn.relu(
        lax.conv_general_dilated(
            x_bf, w_bf, window_strides=(1, 1), padding="SAME",
            dimension_numbers=("NHWC", "HWIO", "NHWC"),
            precision=lax.Precision.HIGHEST) + b_fused)
    ref_nchw = jnp.transpose(ref, (0, 3, 1, 2))

    assert jnp.allclose(y, ref_nchw, atol=2e-2, rtol=2e-2), "mismatch vs reference"
    print("KERNEL_OK")
</pallas_src>

<mosaic_0001>
module attributes {stable_mosaic.version = 11 : i64} {
  func.func @_simconv3x3_bias_relu_kernel(%arg0: i32, %arg1: memref<1x16x64xbf16, #tpu.memory_space<vmem>>, %arg2: memref<3x64x128xbf16, #tpu.memory_space<vmem>>, %arg3: memref<1x128xf32, #tpu.memory_space<vmem>>, %arg4: memref<1x16x128xbf16, #tpu.memory_space<vmem>>, %arg5: memref<18x64xbf16, #tpu.memory_space<vmem>>) attributes {dimension_semantics = [#tpu.dimension_semantics<parallel>], iteration_bounds = array<i64: 2>, scalar_prefetch = 0 : i64, scratch_operands = 1 : i64, tpu.core_type = #tpu.core_type<tc>, window_params = [{transform_indices = @transform_0, window_bounds = array<i64: 1, 16, 64>}, {pipeline_mode = #tpu.pipeline_mode<synchronous>, transform_indices = @transform_1, window_bounds = array<i64: 3, 64, 128>}, {pipeline_mode = #tpu.pipeline_mode<synchronous>, transform_indices = @transform_2, window_bounds = array<i64: 1, 128>}, {transform_indices = @transform_3, window_bounds = array<i64: 1, 16, 128>}]} {
    %cst = arith.constant 0.000000e+00 : bf16
    %0 = vector.broadcast %cst : bf16 to vector<18x64xbf16>
    %c0 = arith.constant 0 : index
    %c0_0 = arith.constant 0 : index
    %1 = vector.load %arg5[%c0, %c0_0] : memref<18x64xbf16, #tpu.memory_space<vmem>>, vector<18x64xbf16>
    tpu.vector_store %arg5[%c0, %c0_0], %0 {strides = array<i32>} : memref<18x64xbf16, #tpu.memory_space<vmem>>, vector<18x64xbf16>,
    %c0_1 = arith.constant 0 : index
    %c0_2 = arith.constant 0 : index
    %c0_3 = arith.constant 0 : index
    %2 = vector.load %arg1[%c0_1, %c0_2, %c0_3] : memref<1x16x64xbf16, #tpu.memory_space<vmem>>, vector<1x16x64xbf16>
    %3 = vector.shape_cast %2 : vector<1x16x64xbf16> to vector<16x64xbf16>
    %c1 = arith.constant 1 : index
    %c0_4 = arith.constant 0 : index
    %4 = vector.load %arg5[%c1, %c0_4] : memref<18x64xbf16, #tpu.memory_space<vmem>>, vector<16x64xbf16>
    tpu.vector_store %arg5[%c1, %c0_4], %3 {strides = array<i32>} : memref<18x64xbf16, #tpu.memory_space<vmem>>, vector<16x64xbf16>,
    %c0_5 = arith.constant 0 : index
    %c0_6 = arith.constant 0 : index
    %5 = vector.load %arg3[%c0_5, %c0_6] : memref<1x128xf32, #tpu.memory_space<vmem>>, vector<1x128xf32>
    %6 = vector.shape_cast %5 : vector<1x128xf32> to vector<1x128xf32>
    %7 = vector.broadcast %6 : vector<1x128xf32> to vector<16x128xf32>
    %c0_7 = arith.constant 0 : index
    %c0_8 = arith.constant 0 : index
    %8 = vector.load %arg5[%c0_7, %c0_8] : memref<18x64xbf16, #tpu.memory_space<vmem>>, vector<16x64xbf16>
    %c0_9 = arith.constant 0 : index
    %c0_10 = arith.constant 0 : index
    %c0_11 = arith.constant 0 : index
    %9 = vector.load %arg2[%c0_9, %c0_10, %c0_11] : memref<3x64x128xbf16, #tpu.memory_space<vmem>>, vector<1x64x128xbf16>
    %10 = vector.shape_cast %9 : vector<1x64x128xbf16> to vector<64x128xbf16>
    %cst_12 = arith.constant dense<0.000000e+00> : vector<16x128xf32>
    %11 = tpu.matmul %8, %10, %cst_12 {dimension_numbers = #tpu.dot_dimension_numbers<[1], [0], [0], [1], [0, 0, 1, 1], [], []>} : vector<16x64xbf16>, vector<64x128xbf16>, vector<16x128xf32> -> vector<16x128xf32>
    %12 = arith.addf %7, %11 : vector<16x128xf32>
    %c1_13 = arith.constant 1 : index
    %c0_14 = arith.constant 0 : index
    %13 = vector.load %arg5[%c1_13, %c0_14] : memref<18x64xbf16, #tpu.memory_space<vmem>>, vector<16x64xbf16>
    %c1_15 = arith.constant 1 : index
    %c0_16 = arith.constant 0 : index
    %c0_17 = arith.constant 0 : index
    %14 = vector.load %arg2[%c1_15, %c0_16, %c0_17] : memref<3x64x128xbf16, #tpu.memory_space<vmem>>, vector<1x64x128xbf16>
    %15 = vector.shape_cast %14 : vector<1x64x128xbf16> to vector<64x128xbf16>
    %cst_18 = arith.constant dense<0.000000e+00> : vector<16x128xf32>
    %16 = tpu.matmul %13, %15, %cst_18 {dimension_numbers = #tpu.dot_dimension_numbers<[1], [0], [0], [1], [0, 0, 1, 1], [], []>} : vector<16x64xbf16>, vector<64x128xbf16>, vector<16x128xf32> -> vector<16x128xf32>
    %17 = arith.addf %12, %16 : vector<16x128xf32>
    %c2 = arith.constant 2 : index
    %c0_19 = arith.constant 0 : index
    %18 = vector.load %arg5[%c2, %c0_19] : memref<18x64xbf16, #tpu.memory_space<vmem>>, vector<16x64xbf16>
    %c2_20 = arith.constant 2 : index
    %c0_21 = arith.constant 0 : index
    %c0_22 = arith.constant 0 : index
    %19 = vector.load %arg2[%c2_20, %c0_21, %c0_22] : memref<3x64x128xbf16, #tpu.memory_space<vmem>>, vector<1x64x128xbf16>
    %20 = vector.shape_cast %19 : vector<1x64x128xbf16> to vector<64x128xbf16>
    %cst_23 = arith.constant dense<0.000000e+00> : vector<16x128xf32>
    %21 = tpu.matmul %18, %20, %cst_23 {dimension_numbers = #tpu.dot_dimension_numbers<[1], [0], [0], [1], [0, 0, 1, 1], [], []>} : vector<16x64xbf16>, vector<64x128xbf16>, vector<16x128xf32> -> vector<16x128xf32>
    %22 = arith.addf %17, %21 : vector<16x128xf32>
    %cst_24 = arith.constant 0.000000e+00 : f32
    %23 = vector.broadcast %cst_24 : f32 to vector<16x128xf32>
    %24 = arith.maximumf %22, %23 : vector<16x128xf32>
    %25 = arith.truncf %24 : vector<16x128xf32> to vector<16x128xbf16>
    %c0_25 = arith.constant 0 : index
    %c0_26 = arith.constant 0 : index
    %c0_27 = arith.constant 0 : index
    %26 = vector.load %arg4[%c0_25, %c0_26, %c0_27] : memref<1x16x128xbf16, #tpu.memory_space<vmem>>, vector<1x16x128xbf16>
    %27 = vector.shape_cast %26 : vector<1x16x128xbf16> to vector<16x128xbf16>
    %28 = vector.shape_cast %25 : vector<16x128xbf16> to vector<1x16x128xbf16>
    tpu.vector_store %arg4[%c0_25, %c0_26, %c0_27], %28 {strides = array<i32>} : memref<1x16x128xbf16, #tpu.memory_space<vmem>>, vector<1x16x128xbf16>,
    return
  }
  func.func @transform_0(%arg0: i32) -> (i32, i32, i32) {
    %c0_i32 = arith.constant 0 : i32
    %c0_i32_0 = arith.constant 0 : i32
    %c0_i32_1 = arith.constant 0 : i32
    return %arg0, %c0_i32, %c0_i32_0 : i32, i32, i32
  }
  func.func @transform_1(%arg0: i32) -> (i32, i32, i32) {
    %c0_i32 = arith.constant 0 : i32
    %c0_i32_0 = arith.constant 0 : i32
    %c0_i32_1 = arith.constant 0 : i32
    %c0_i32_2 = arith.constant 0 : i32
    return %c0_i32, %c0_i32_0, %c0_i32_1 : i32, i32, i32
  }
  func.func @transform_2(%arg0: i32) -> (i32, i32) {
    %c0_i32 = arith.constant 0 : i32
    %c0_i32_0 = arith.constant 0 : i32
    %c0_i32_1 = arith.constant 0 : i32
    return %c0_i32, %c0_i32_0 : i32, i32
  }
  func.func @transform_3(%arg0: i32) -> (i32, i32, i32) {
    %c0_i32 = arith.constant 0 : i32
    %c0_i32_0 = arith.constant 0 : i32
    %c0_i32_1 = arith.constant 0 : i32
    return %arg0, %c0_i32, %c0_i32_0 : i32, i32, i32
  }
}

</mosaic_0001>

<llo_original>
// kernel: tile.8
$region0: #{tile.8}
  #allocation2 [shape = 's32[1]{0}', space=sflag, size = 0x4, scoped, tag = 'scoped memory for tile.8']
  %s0 = inlined_call_operand.hbm [shape: f32[8], index: 0, kind: input, shape index: {}]
  %s1 = inlined_call_operand.vmem [shape: f32[16,8], index: 1, kind: output, shape index: {}]
  $region1: #{tile.8} parent=0
    #allocation0 [shape = 'u8[512]{0}', space=vmem, size = 0x400, scoped, tag = 'operand span for operand 0']
    #allocation1 [shape = 's32[1]{0}', space=sflag, size = 0x4, scoped, tag = 'scoped memory for tile.8']
    %2 = vsyncpa [#allocation1], 0
    // Predicated region
    $region2: #{tile.8} parent=1 // pred_check
      _
    $region3: #{tile.8} parent=1 // pred_check_branch
      %4 = sbr.rel (0) target = $region5
    $region4: #{tile.8} parent=1 // pred_region
      %6 = vsyncadd [#allocation1], 0
      %s8 = sshll.u32 %s0, 4
      %s9 = int_to_ptr.hbm [resolvable:$true] %s8
      %s10 = sshll.u32 [#allocation0], 4
      %s11 = int_to_ptr.vmem [resolvable:$true] %s10
      %13 = dma.hbm_to_vmem [thread:$0]  %s9, 16, %s11, [#allocation1]
    $region5: #{tile.8} parent=1 // pred_fallthru
      _
    // Predicated region
    $region6: #{tile.8} parent=1 // pred_check
      _
    $region7: #{tile.8} parent=1 // pred_check_branch
      %15 = sbr.rel (0) target = $region9
    $region8: #{tile.8} parent=1 // pred_region
      %17 = dma.done [#allocation1], 16
    $region9: #{tile.8} parent=1 // pred_fallthru
      _
    %v18 = vld [vmem:[#allocation0] ss:$0 sm:$0xff]
    %19 = vst [vmem:[%s1] sm:$0xff] %v18
    %s20 = scalar_lea.vmem %s1, 8
    %21 = vst [vmem:[%s20] sm:$0xff] %v18
    %22 = vsyncpa [#allocation1], 1

// kernel: tile.9
$region0: #{tile.9}
  %s0 = inlined_call_operand.vmem [shape: f32[16,8], index: 0, kind: input, shape index: {}]
  %s1 = inlined_call_operand.vmem [shape: f32[1,128], index: 1, kind: output, shape index: {}]
  $region1: #{tile.9} parent=0
    #allocation0 [shape = 'u8[4096]{0}', space=vmem, size = 0x1000, scoped, tag = 'scoped mem for output reshape']
    %v2 = vld [vmem:[%s0] sm:$0x1]
    %vm3 = vcmask 64512
    %4 = vst.msk [vmem:[#allocation0] sm:$0x1] %vm3, %v2
    %s5 = scalar_lea.vmem %s0, 15
    %v6 = vld [vmem:[%s5] sm:$0x1]
    %7 = vrot.lane.b32.xlu0 %v6, 120
    %v8 = vpop.permute.xlu0 %7
    %vm9 = vcmask 1048512
    %10 = vst.msk [vmem:[#allocation0] sm:$0x1] %vm9, %v8
    %s11 = scalar_lea.vmem %s0, 14
    %v12 = vld [vmem:[%s11] sm:$0x1]
    %13 = vrot.lane.b32.xlu0 %v12, 112
    %v14 = vpop.permute.xlu0 %13
    %vm15 = vcmask 982912
    %16 = vst.msk [vmem:[#allocation0] sm:$0x1] %vm15, %v14
    %s17 = scalar_lea.vmem %s0, 13
    %v18 = vld [vmem:[%s17] sm:$0x1]
    %19 = vrot.lane.b32.xlu0 %v18, 104
    %v20 = vpop.permute.xlu0 %19
    %vm21 = vcmask 917312
    %22 = vst.msk [vmem:[#allocation0] sm:$0x1] %vm21, %v20
    %s23 = scalar_lea.vmem %s0, 12
    %v24 = vld [vmem:[%s23] sm:$0x1]
    %25 = vrot.lane.b32.xlu0 %v24, 96
    %v26 = vpop.permute.xlu0 %25
    %vm27 = vcmask 851712
    %28 = vst.msk [vmem:[#allocation0] sm:$0x1] %vm27, %v26
    %s29 = scalar_lea.vmem %s0, 11
    %v30 = vld [vmem:[%s29] sm:$0x1]
    %31 = vrot.lane.b32.xlu0 %v30, 88
    %v32 = vpop.permute.xlu0 %31
    %vm33 = vcmask 786112
    %34 = vst.msk [vmem:[#allocation0] sm:$0x1] %vm33, %v32
    %s35 = scalar_lea.vmem %s0, 10
    %v36 = vld [vmem:[%s35] sm:$0x1]
    %37 = vrot.lane.b32.xlu0 %v36, 80
    %v38 = vpop.permute.xlu0 %37
    %vm39 = vcmask 720512
    %40 = vst.msk [vmem:[#allocation0] sm:$0x1] %vm39, %v38
    %s41 = scalar_lea.vmem %s0, 9
    %v42 = vld [vmem:[%s41] sm:$0x1]
    %43 = vrot.lane.b32.xlu0 %v42, 72
    %v44 = vpop.permute.xlu0 %43
    %vm45 = vcmask 654912
    %46 = vst.msk [vmem:[#allocation0] sm:$0x1] %vm45, %v44
    %s47 = scalar_lea.vmem %s0, 8
    %v48 = vld [vmem:[%s47] sm:$0x1]
    %49 = vrot.lane.b32.xlu0 %v48, 64
    %v50 = vpop.permute.xlu0 %49
    %vm51 = vcmask 589312
    %52 = vst.msk [vmem:[#allocation0] sm:$0x1] %vm51, %v50
    %s53 = scalar_lea.vmem %s0, 7
    %v54 = vld [vmem:[%s53] sm:$0x1]
    %55 = vrot.lane.b32.xlu0 %v54, 56
    %v56 = vpop.permute.xlu0 %55
    %vm57 = vcmask 523712
    %58 = vst.msk [vmem:[#allocation0] sm:$0x1] %vm57, %v56
    %s59 = scalar_lea.vmem %s0, 6
    %v60 = vld [vmem:[%s59] sm:$0x1]
    %61 = vrot.lane.b32.xlu0 %v60, 48
    %v62 = vpop.permute.xlu0 %61
    %vm63 = vcmask 458112
    %64 = vst.msk [vmem:[#allocation0] sm:$0x1] %vm63, %v62
    %s65 = scalar_lea.vmem %s0, 5
    %v66 = vld [vmem:[%s65] sm:$0x1]
    %67 = vrot.lane.b32.xlu0 %v66, 40
    %v68 = vpop.permute.xlu0 %67
    %vm69 = vcmask 392512
    %70 = vst.msk [vmem:[#allocation0] sm:$0x1] %vm69, %v68
    %s71 = scalar_lea.vmem %s0, 4
    %v72 = vld [vmem:[%s71] sm:$0x1]
    %73 = vrot.lane.b32.xlu0 %v72, 32
    %v74 = vpop.permute.xlu0 %73
    %vm75 = vcmask 326912
    %76 = vst.msk [vmem:[#allocation0] sm:$0x1] %vm75, %v74
    %s77 = scalar_lea.vmem %s0, 3
    %v78 = vld [vmem:[%s77] sm:$0x1]
    %79 = vrot.lane.b32.xlu0 %v78, 24
    %v80 = vpop.permute.xlu0 %79
    %vm81 = vcmask 261312
    %82 = vst.msk [vmem:[#allocation0] sm:$0x1] %vm81, %v80
    %s83 = scalar_lea.vmem %s0, 2
    %v84 = vld [vmem:[%s83] sm:$0x1]
    %85 = vrot.lane.b32.xlu0 %v84, 16
    %v86 = vpop.permute.xlu0 %85
    %vm87 = vcmask 195712
    %88 = vst.msk [vmem:[#allocation0] sm:$0x1] %vm87, %v86
    %s89 = scalar_lea.vmem %s0, 1
    %v90 = vld [vmem:[%s89] sm:$0x1]
    %91 = vrot.lane.b32.xlu0 %v90, 8
    %v92 = vpop.permute.xlu0 %91
    %vm93 = vcmask 130112
    %94 = vst.msk [vmem:[#allocation0] sm:$0x1] %vm93, %v92
    %s96 = ssub.s32 2, 1
    %v97 = vld [vmem:[#allocation0] sm:%s96]
    %s99 = ssub.s32 2, 1
    %100 = vst [vmem:[%s1] sm:%s99] %v97

// kernel: simconv_forward.1
$region0: #{simconv_forward.1}
  #allocation0 [shape = 'u32[]', space=smem, size = 0x4, offset = 0x4, fixed_abs, tag = 'smem constant byte address 0x4 - core index']
  #allocation1 [shape = 'u32[72,128]{1,0:T(1,128)}', space=vmem, size = 0x9000, scoped, tag = 'internal scratch']
  #allocation2 [shape = 'bf16[18,64]{1,0:T(8,128)(2,1)}', space=vmem, size = 0x1800, scoped, tag = 'scratch operand']
  %s0 = inlined_call_operand.vmem [shape: bf16[2,16,64], index: 0, kind: input, shape index: {}]
  %s1 = inlined_call_operand.vmem [shape: bf16[3,64,128], index: 1, kind: input, shape index: {}]
  %s2 = inlined_call_operand.vmem [shape: f32[1,128], index: 2, kind: input, shape index: {}]
  %s3 = inlined_call_operand.vmem [shape: bf16[2,16,128], index: 3, kind: output, shape index: {}]
  %s4 = sld [smem:[#allocation0]]
  $region45: #{simconv_forward.1} parent=0
    _
  %s6 = ssub.s32 1, %s4
  %s7 = scalar_select 0, %s6, %s4
  loop: start=0, step=1, limit=4
  $region2: #{simconv_forward.1} parent=0 // loop_pre_header
    _
  $region3: #{simconv_forward.1} parent=0 // loop_header
    %s9 = sphi 0, %s13
    %p10 = scmp.ge.s32.totalorder %s9, 4
    %s19 = sphi 0, %s21
    %s22 = sphi 0, %s19
    %s23 = sphi 0, %s22
    %s39 = sphi 0, %s23
    %s43 = sphi 0, %s43
    %s45 = sphi 0, %s43
    %s46 = sphi 0, %s45
    %s60 = sphi 0, %s46
    %s64 = sphi 0, %s64
    %s66 = sphi 0, %s64
    %s67 = sphi 0, %s66
    %s81 = sphi 0, %s67
    %s87 = sphi 0, %s89
    %s90 = sphi 0, %s87
    %s91 = sphi 0, %s90
    %s107 = sphi 0, %s91
  $region4: #{simconv_forward.1} parent=0 // loop_header_branch
    %12 = sbr.rel (%p10) target = $region8
  $region5: #{simconv_forward.1} parent=0 // loop_body
    %s14 = ssub.s32 %s9, 1
    %s15 = ssub.s32 %s9, 2
    %s16 = sadd.s32 %s9, 1
    %s17 = ssub.s32 %s9, %s16
    %p18 = scmp.eq.s32.totalorder %s17, 0
    %s20 = sadd.s32 %s19, 1
    %s21 = scalar_select %p18, %s19, %s20
    %p24 = pneg %p18
    %p25 = scmp.eq.s32.totalorder %s9, 1
    %p26 = por %p24, %p25
    %p27 = scmp.ne.s32.totalorder %s19, %s22
    %p28 = scmp.eq.s32.totalorder %s9, 0
    %p29 = por %p27, %p28
    %p30 = scmp.ne.s32.totalorder %s19, %s22
    %p31 = scmp.eq.s32.totalorder %s14, 1
    %p32 = por %p30, %p31
    %p33 = scmp.ne.s32.totalorder %s22, %s23
    %p34 = scmp.eq.s32.totalorder %s14, 0
    %p35 = por %p33, %p34
    %p36 = scmp.ne.s32.totalorder %s22, %s23
    %p37 = scmp.eq.s32.totalorder %s15, 1
    %p38 = por %p36, %p37
    %p40 = scmp.ne.s32.totalorder %s23, %s39
    %p41 = scmp.eq.s32.totalorder %s15, 0
    %p42 = por %p40, %p41
    %s44 = sadd.s32 %s43, 1
    %p47 = scmp.eq.s32.totalorder %s9, 1
    %p48 = scmp.ne.s32.totalorder %s43, %s45
    %p49 = scmp.eq.s32.totalorder %s9, 0
    %p50 = por %p48, %p49
    %p51 = scmp.ne.s32.totalorder %s43, %s45
    %p52 = scmp.eq.s32.totalorder %s14, 1
    %p53 = por %p51, %p52
    %p54 = scmp.ne.s32.totalorder %s45, %s46
    %p55 = scmp.eq.s32.totalorder %s14, 0
    %p56 = por %p54, %p55
    %p57 = scmp.ne.s32.totalorder %s45, %s46
    %p58 = scmp.eq.s32.totalorder %s15, 1
    %p59 = por %p57, %p58
    %p61 = scmp.ne.s32.totalorder %s46, %s60
    %p62 = scmp.eq.s32.totalorder %s15, 0
    %p63 = por %p61, %p62
    %s65 = sadd.s32 %s64, 1
    %p68 = scmp.eq.s32.totalorder %s9, 1
    %p69 = scmp.ne.s32.totalorder %s64, %s66
    %p70 = scmp.eq.s32.totalorder %s9, 0
    %p71 = por %p69, %p70
    %p72 = scmp.ne.s32.totalorder %s64, %s66
    %p73 = scmp.eq.s32.totalorder %s14, 1
    %p74 = por %p72, %p73
    %p75 = scmp.ne.s32.totalorder %s66, %s67
    %p76 = scmp.eq.s32.totalorder %s14, 0
    %p77 = por %p75, %p76
    %p78 = scmp.ne.s32.totalorder %s66, %s67
    %p79 = scmp.eq.s32.totalorder %s15, 1
    %p80 = por %p78, %p79
    %p82 = scmp.ne.s32.totalorder %s67, %s81
    %p83 = scmp.eq.s32.totalorder %s15, 0
    %p84 = por %p82, %p83
    %s85 = ssub.s32 %s9, %s16
    %p86 = scmp.eq.s32.totalorder %s85, 0
    %s88 = sadd.s32 %s87, 1
    %s89 = scalar_select %p86, %s87, %s88
    %p92 = pneg %p86
    %p93 = scmp.eq.s32.totalorder %s9, 1
    %p94 = por %p92, %p93
    %p95 = scmp.ne.s32.totalorder %s87, %s90
    %p96 = scmp.eq.s32.totalorder %s9, 0
    %p97 = por %p95, %p96
    %p98 = scmp.ne.s32.totalorder %s87, %s90
    %p99 = scmp.eq.s32.totalorder %s14, 1
    %p100 = por %p98, %p99
    %p101 = scmp.ne.s32.totalorder %s90, %s91
    %p102 = scmp.eq.s32.totalorder %s14, 0
    %p103 = por %p101, %p102
    %p104 = scmp.ne.s32.totalorder %s90, %s91
    %p105 = scmp.eq.s32.totalorder %s15, 1
    %p106 = por %p104, %p105
    %p108 = scmp.ne.s32.totalorder %s91, %s107
    %p109 = scmp.eq.s32.totalorder %s15, 0
    %p110 = por %p108, %p109
    %p111 = scmp.le.s32.totalorder 1, %s9
    %p112 = scmp.lt.s32.totalorder %s9, 3
    %p113 = pnand %p111, %p112
    %p114 = pneg %p113
    // Predicated region
    $region9: #{simconv_forward.1} parent=5 // pred_check
      _
    $region10: #{simconv_forward.1} parent=5 // pred_check_branch
      %116 = sbr.rel (%p113) target = $region12
    $region11: #{simconv_forward.1} parent=5 // pred_region
      %s117 = ssub.s32 %s9, 1
      // Predicated region
      $region13: #{simconv_forward.1} parent=11 // pred_check
        %p118 = pneg %p56
      $region14: #{simconv_forward.1} parent=11 // pred_check_branch
        %120 = sbr.rel (%p118) target = $region16
      $region15: #{simconv_forward.1} parent=11 // pred_region
        _
      $region16: #{simconv_forward.1} parent=11 // pred_fallthru
        _
      // Predicated region
      $region17: #{simconv_forward.1} parent=11 // pred_check
        %p121 = pneg %p77
      $region18: #{simconv_forward.1} parent=11 // pred_check_branch
        %123 = sbr.rel (%p121) target = $region20
      $region19: #{simconv_forward.1} parent=11 // pred_region
        _
      $region20: #{simconv_forward.1} parent=11 // pred_fallthru
        _
    $region12: #{simconv_forward.1} parent=5 // pred_fallthru
      _
    %p124 = scmp.lt.s32.totalorder %s9, 2
    // Predicated region
    $region21: #{simconv_forward.1} parent=5 // pred_check
      %p125 = pneg %p124
    $region22: #{simconv_forward.1} parent=5 // pred_check_branch
      %127 = sbr.rel (%p125) target = $region24
    $region23: #{simconv_forward.1} parent=5 // pred_region
      // Predicated region
      $region25: #{simconv_forward.1} parent=23 // pred_check
        %p128 = pneg %p29
      $region26: #{simconv_forward.1} parent=23 // pred_check_branch
        %130 = sbr.rel (%p128) target = $region28
      $region27: #{simconv_forward.1} parent=23 // pred_region
        %p131 = scmp.lt.s32.totalorder %s9, 1
        %s132 = scalar_select %p131, %s9, 1
        %s133 = smul.addr %s132, 2
        %s134 = smul.addr %s133, 4
        %s135 = scalar_lea.vmem %s0, %s134
      $region28: #{simconv_forward.1} parent=23 // pred_fallthru
        _
    $region24: #{simconv_forward.1} parent=5 // pred_fallthru
      _
    %p136 = scmp.le.s32.totalorder 1, %s9
    %p137 = scmp.lt.s32.totalorder %s9, 3
    %p138 = pnand %p136, %p137
    %p139 = pneg %p138
    // Predicated region
    $region29: #{simconv_forward.1} parent=5 // pred_check
      _
    $region30: #{simconv_forward.1} parent=5 // pred_check_branch
      %141 = sbr.rel (%p138) target = $region32
    $region31: #{simconv_forward.1} parent=5 // pred_region
      %s142 = ssub.s32 %s9, 1
      %p143 = scmp.lt.s32.totalorder %s14, 1
      %s144 = scalar_select %p143, %s14, 1
      %s145 = smul.addr %s144, 2
      %s146 = smul.addr %s145, 4
      %s147 = scalar_lea.vmem %s0, %s146
      %p148 = pneg %p35
      %p149 = pneg %p32
      %p150 = pneg %p56
      %p151 = pneg %p53
      %p152 = pneg %p77
      %p153 = pneg %p74
      %p154 = pneg %p103
      %p155 = pneg %p100
      %p156 = scmp.lt.s32.totalorder %s14, 1
      %s157 = scalar_select %p156, %s14, 1
      %s158 = smul.addr %s157, 2
      %s159 = smul.addr %s158, 4
      %s160 = scalar_lea.vmem %s3, %s159
      %p161 = scmp.lt.s32.totalorder %s14, 1
      %s162 = scalar_select %p161, %s14, 1
      %s163 = smul.addr %s162, 2
      %s164 = smul.addr %s163, 4
      %s165 = scalar_lea.vmem %s0, %s164
      %p166 = scmp.lt.s32.totalorder %s14, 1
      %s167 = scalar_select %p166, %s14, 1
      %s168 = smul.addr %s167, 2
      %s169 = smul.addr %s168, 4
      %s170 = scalar_lea.vmem %s3, %s169
      %vm172 = vcmask 519168
      %173 = vst.msk [vmem:[#allocation2] sm:$0xf] %vm172, 0
      %174 = vst.msk [vmem:[#allocation2 + $0x4] sm:$0xf] %vm172, 0
      %vm175 = vcmask 516096
      %176 = vst.msk [vmem:[#allocation2 + $0x8] sm:$0x1] %vm175, 0
      %v177 = vld [vmem:[%s165] sm:$0xf]
      %v178 = vld [vmem:[%s165 + $0x4] sm:$0xf]
      %vm179 = vsmask.f32 256
      %vm180 = vsmask.f32 4368
      %vm181 = vmor %vm179, %vm180
      %v183 = vshrl.u32 %v177, 16
      %v185 = vrot.slane %v183, 7
      %v186 = vshll.u32 %v177, 16
      %v188 = vor.u32 %v185, %v186
      %v189 = vrot.slane %v185, 4
      %v191 = vshrl.u32 %v178, 16
      %v193 = vrot.slane %v191, 7
      %v194 = vshll.u32 %v178, 16
      %v196 = vor.u32 %v193, %v194
      %v197 = vsel %vm181, %v189, %v196
      %v198 = vrot.slane %v193, 4
      %vm202 = vcmask 519168
      %vm203 = vsmask.f32 7938
      %vm204 = vmand %vm202, %vm203
      %v205 = vld [vmem:[#allocation2] sm:$0xf]
      %v206 = vsel %vm204, %v188, %v205
      %207 = vst [vmem:[#allocation2] sm:$0xf] %v206
      %208 = vst.msk [vmem:[#allocation2 + $0x4] sm:$0xf] %vm172, %v197
      %vm209 = vcmask 516096
      %vm210 = vmand %vm209, %vm179
      %v211 = vld [vmem:[#allocation2 + $0x8] sm:$0x1]
      %v212 = vsel %vm210, %v198, %v211
      %213 = vst [vmem:[#allocation2 + $0x8] sm:$0x1] %v212
      %v214 = vld [vmem:[%s2] sm:$0x1]
      %v216 = vperm.slane %v214, 0
      %v218 = vld [vmem:[#allocation2] sm:$0xf]
      %v219 = vld [vmem:[#allocation2 + $0x4] sm:$0xf]
      %v220 = vld [vmem:[%s1] sm:$0xf]
      %v221 = vld [vmem:[%s1 + $0x4] sm:$0xf]
      %v222 = vld [vmem:[%s1 + $0x8] sm:$0xf]
      %v223 = vld [vmem:[%s1 + $0xc] sm:$0xf]
      %v224 = vld [vmem:[%s1 + $0x10] sm:$0xf]
      %v225 = vld [vmem:[%s1 + $0x14] sm:$0xf]
      %v226 = vld [vmem:[%s1 + $0x18] sm:$0xf]
      %v227 = vld [vmem:[%s1 + $0x1c] sm:$0xf]
      %v230 = vunpack.c.l.b16 %v218
      %v231 = vunpack.c.l.b16 %v219
      %v232 = vpack.c.b16 %v231, %v230
      %v241 = vunpack.c.l.b16 %v220
      %v242 = vunpack.c.l.b16 %v221
      %v243 = vunpack.c.l.b16 %v222
      %v244 = vunpack.c.l.b16 %v223
      %v245 = vunpack.c.l.b16 %v224
      %v246 = vunpack.c.l.b16 %v225
      %v247 = vunpack.c.l.b16 %v226
      %v248 = vunpack.c.l.b16 %v227
      %v249 = vpack.c.b16 %v242, %v241
      %v250 = vpack.c.b16 %v244, %v243
      %v251 = vpack.c.b16 %v246, %v245
      %v252 = vpack.c.b16 %v248, %v247
      %vm257 = vcmask 523264
      %v259 = vsel %vm257, %v232, 0
      %261 = vmatpush.bf16.msra.mxu0 0
      %262 = vmatpush.bf16.msra.mxu0 0
      %263 = vmatpush.bf16.msra.mxu0 0
      %264 = vmatpush.bf16.msra.mxu0 0
      %265 = vmatpush.bf16.msra.mxu0 %v252
      %266 = vmatpush.bf16.msra.mxu0 %v251
      %267 = vmatpush.bf16.msra.mxu0 %v250
      %268 = vmatpush.bf16.msra.mxu0 %v249
      %269 = vmatmul.bf16.gmra.mxu0 %v259
      %v270 = vpop.f32.mrf.mxu0
      %v271 = vadd.f32 0.0, %v270
      %v272 = vpop.f32.mrf.mxu0
      %v273 = vadd.f32 0.0, %v272
      %274 = vdwg.mxu0
      %v275 = vadd.f32 %v216, %v271
      %v276 = vadd.f32 %v216, %v273
      %v277 = vld [vmem:[#allocation2] sm:$0xf]
      %v278 = vld [vmem:[#allocation2 + $0x4] sm:$0xf]
      %v279 = vld [vmem:[#allocation2 + $0x8] sm:$0x1]
      %s280 = scalar_lea.vmem %s1, 32
      %v281 = vld [vmem:[%s280] sm:$0xf]
      %v282 = vld [vmem:[%s280 + $0x4] sm:$0xf]
      %v283 = vld [vmem:[%s280 + $0x8] sm:$0xf]
      %v284 = vld [vmem:[%s280 + $0xc] sm:$0xf]
      %v285 = vld [vmem:[%s280 + $0x10] sm:$0xf]
      %v286 = vld [vmem:[%s280 + $0x14] sm:$0xf]
      %v287 = vld [vmem:[%s280 + $0x18] sm:$0xf]
      %v288 = vld [vmem:[%s280 + $0x1c] sm:$0xf]
      %v292 = vunpack.c.l.b16 %v277
      %v293 = vunpack.c.l.b16 %v278
      %v294 = vunpack.c.l.b16 %v279
      %v295 = vpack.c.b16 %v293, %v292
      %v296 = vpack.c.b16 %v294, %v294
      %vm297 = vsmask.f32 7424
      %v299 = vshrl.u32 %v295, 16
      %v301 = vshll.u32 %v295, 16
      %v303 = vrot.slane %v301, 1
      %v304 = vor.u32 %v299, %v303
      %v306 = vshll.u32 %v296, 16
      %v308 = vrot.slane %v306, 1
      %v309 = vsel %vm297, %v304, %v308
      %v318 = vunpack.c.l.b16 %v281
      %v319 = vunpack.c.l.b16 %v282
      %v320 = vunpack.c.l.b16 %v283
      %v321 = vunpack.c.l.b16 %v284
      %v322 = vunpack.c.l.b16 %v285
      %v323 = vunpack.c.l.b16 %v286
      %v324 = vunpack.c.l.b16 %v287
      %v325 = vunpack.c.l.b16 %v288
      %v326 = vpack.c.b16 %v319, %v318
      %v327 = vpack.c.b16 %v321, %v320
      %v328 = vpack.c.b16 %v323, %v322
      %v329 = vpack.c.b16 %v325, %v324
      %v335 = vsel %vm257, %v309, 0
      %337 = vmatpush.bf16.msra.mxu0 0
      %338 = vmatpush.bf16.msra.mxu0 0
      %339 = vmatpush.bf16.msra.mxu0 0
      %340 = vmatpush.bf16.msra.mxu0 0
      %341 = vmatpush.bf16.msra.mxu0 %v329
      %342 = vmatpush.bf16.msra.mxu0 %v328
      %343 = vmatpush.bf16.msra.mxu0 %v327
      %344 = vmatpush.bf16.msra.mxu0 %v326
      %345 = vmatmul.bf16.gmra.mxu0 %v335
      %v346 = vpop.f32.mrf.mxu0
      %v347 = vadd.f32 0.0, %v346
      %v348 = vpop.f32.mrf.mxu0
      %v349 = vadd.f32 0.0, %v348
      %350 = vdwg.mxu0
      %v351 = vadd.f32 %v275, %v347
      %v352 = vadd.f32 %v276, %v349
      %v353 = vld [vmem:[#allocation2] sm:$0xe]
      %s354 = scalar_lea.vmem %s1, 64
      %v355 = vld [vmem:[%s354] sm:$0xf]
      %v356 = vld [vmem:[%s354 + $0x4] sm:$0xf]
      %v357 = vld [vmem:[%s354 + $0x8] sm:$0xf]
      %v358 = vld [vmem:[%s354 + $0xc] sm:$0xf]
      %v359 = vld [vmem:[%s354 + $0x10] sm:$0xf]
      %v360 = vld [vmem:[%s354 + $0x14] sm:$0xf]
      %v361 = vld [vmem:[%s354 + $0x18] sm:$0xf]
      %v362 = vld [vmem:[%s354 + $0x1c] sm:$0xf]
      %v364 = vunpack.c.l.b16 %v353
      %v365 = vpack.c.b16 %v293, %v364
      %vm366 = vcmask 1046528
      %v367 = vrot.slane %v365, 1
      %v368 = vrot.slane %v296, 1
      %v369 = vsel %vm366, %v367, %v368
      %v378 = vunpack.c.l.b16 %v355
      %v379 = vunpack.c.l.b16 %v356
      %v380 = vunpack.c.l.b16 %v357
      %v381 = vunpack.c.l.b16 %v358
      %v382 = vunpack.c.l.b16 %v359
      %v383 = vunpack.c.l.b16 %v360
      %v384 = vunpack.c.l.b16 %v361
      %v385 = vunpack.c.l.b16 %v362
      %v386 = vpack.c.b16 %v379, %v378
      %v387 = vpack.c.b16 %v381, %v380
      %v388 = vpack.c.b16 %v383, %v382
      %v389 = vpack.c.b16 %v385, %v384
      %v395 = vsel %vm257, %v369, 0
      %397 = vmatpush.bf16.msra.mxu0 0
      %398 = vmatpush.bf16.msra.mxu0 0
      %399 = vmatpush.bf16.msra.mxu0 0
      %400 = vmatpush.bf16.msra.mxu0 0
      %401 = vmatpush.bf16.msra.mxu0 %v389
      %402 = vmatpush.bf16.msra.mxu0 %v388
      %403 = vmatpush.bf16.msra.mxu0 %v387
      %404 = vmatpush.bf16.msra.mxu0 %v386
      %405 = vmatmul.bf16.gmra.mxu0 %v395
      %v406 = vpop.f32.mrf.mxu0
      %v407 = vadd.f32 0.0, %v406
      %v408 = vpop.f32.mrf.mxu0
      %v409 = vadd.f32 0.0, %v408
      %410 = vdwg.mxu0
      %v411 = vadd.f32 %v351, %v407
      %v412 = vadd.f32 %v352, %v409
      %v413 = vmax.f32 %v411, 0.0
      %v414 = vmax.f32 %v412, 0.0
      %v415 = vpack.c.bf16 %v413, %v413
      %v416 = vpack.c.bf16 %v414, %v414
      %417 = vst [vmem:[%s170] sm:$0xf] %v415
      %418 = vst [vmem:[%s170 + $0x4] sm:$0xf] %v416
      %p419 = scmp.lt.s32.totalorder %s14, 1
      %s420 = scalar_select %p419, %s14, 1
      %s421 = smul.addr %s420, 2
      %s422 = smul.addr %s421, 4
      %s423 = scalar_lea.vmem %s3, %s422
      // Predicated region
      $region33: #{simconv_forward.1} parent=31 // pred_check
        %p424 = pneg %p100
      $region34: #{simconv_forward.1} parent=31 // pred_check_branch
        %426 = sbr.rel (%p424) target = $region36
      $region35: #{simconv_forward.1} parent=31 // pred_region
        _
      $region36: #{simconv_forward.1} parent=31 // pred_fallthru
        _
    $region32: #{simconv_forward.1} parent=5 // pred_fallthru
      _
    %p427 = scmp.le.s32.totalorder 2, %s9
    // Predicated region
    $region37: #{simconv_forward.1} parent=5 // pred_check
      %p428 = pneg %p427
    $region38: #{simconv_forward.1} parent=5 // pred_check_branch
      %430 = sbr.rel (%p428) target = $region40
    $region39: #{simconv_forward.1} parent=5 // pred_region
      %s431 = ssub.s32 %s9, 2
      // Predicated region
      $region41: #{simconv_forward.1} parent=39 // pred_check
        %p432 = pneg %p106
      $region42: #{simconv_forward.1} parent=39 // pred_check_branch
        %434 = sbr.rel (%p432) target = $region44
      $region43: #{simconv_forward.1} parent=39 // pred_region
        %p435 = scmp.lt.s32.totalorder %s15, 1
        %s436 = scalar_select %p435, %s15, 1
        %s437 = smul.addr %s436, 2
        %s438 = smul.addr %s437, 4
        %s439 = scalar_lea.vmem %s3, %s438
      $region44: #{simconv_forward.1} parent=39 // pred_fallthru
        _
    $region40: #{simconv_forward.1} parent=5 // pred_fallthru
      _
  $region6: #{simconv_forward.1} parent=0 // loop_footer
    %s13 = sadd.s32 1, %s9
  $region7: #{simconv_forward.1} parent=0 // loop_footer_branch
    %8 = sbr.rel target = $region3
  $region8: #{simconv_forward.1} parent=0 // loop_exit
    _

</llo_original>
